<compile_context>
chip_gen: v6e
topology: v6e:2x2x1
jax: 0.10.0
libtpu: 0.0.40
codegen_flags: <defaults>
</compile_context>

<pallas_src>
import jax
import jax.numpy as jnp
from jax.experimental import pallas as pl
from jax.experimental.pallas import tpu as pltpu


def _avg_encoder_kernel(tokens_ref, mask_ref, lengths_ref, out_ref, acc_ref):
    """One (TB, TL, D) tile of the masked mean.

    tokens_ref : (TB, TL, D) native dtype (f32 / bf16 / ...)
    mask_ref   : (TB, TL, 1) f32
    lengths_ref: (TB, 1)     f32
    out_ref    : (TB, D)     f32   (resident across the L grid axis)
    acc_ref    : (TB, D)     f32   VMEM scratch accumulator
    """
    l = pl.program_id(1)

    @pl.when(l == 0)
    def _init():
        acc_ref[...] = jnp.zeros_like(acc_ref)

    tokens = tokens_ref[...].astype(jnp.float32)           # (TB, TL, D) upcast in VMEM
    mask = mask_ref[...]                                    # (TB, TL, 1) lane-broadcast over D
    acc_ref[...] += jnp.sum(tokens * mask, axis=1)          # (TB, D) VPU mul + sublane reduce

    @pl.when(l == pl.num_programs(1) - 1)
    def _finalize():
        # Exact reciprocal (approx=True would break the 1e-5 tolerance).
        inv = pl.reciprocal(lengths_ref[...] + 1.0, approx=False)  # (TB, 1)
        out_ref[...] = (acc_ref[...] * inv).astype(out_ref.dtype)


def _divisor_tile(extent: int, max_tile: int, granule: int) -> int:
    """Largest t with extent % t == 0, t <= max_tile, t % granule == 0.

    Falls back to the full extent (single block along this axis) when no such
    divisor exists; a full-extent block always satisfies the (8, 128) rule.
    """
    if extent <= max_tile:
        return extent
    best = 0
    t = granule
    while t <= max_tile:
        if extent % t == 0:
            best = t
        t += granule
    return best if best > 0 else extent


def average_encoder(
    tokens: jax.Array,
    lengths: jax.Array,
    mask: jax.Array,
    *,
    tokens_buffer_bytes: int = 4 * 1024 * 1024,
) -> jax.Array:
    """Pallas implementation of AverageEncoder.forward.

    tokens:  (B, L, D) any float dtype (streamed natively, accumulated in f32)
    lengths: (B,)      int or float
    mask:    (B, L)    {0,1} mask (any numeric/bool dtype)
    returns: (B, D)    float32 (matches PyTorch promotion via mask.float())
    """
    B, L, D = tokens.shape
    itemsize = jnp.dtype(tokens.dtype).itemsize

    # Small side inputs (bytes negligible vs tokens): lane-friendly layouts.
    mask_f = mask.reshape(B, L, 1).astype(jnp.float32)
    lengths_f = lengths.reshape(B, 1).astype(jnp.float32)

    # Batch tile: keep the resident accumulator small; multiple of 8 when < B.
    TB = _divisor_tile(B, 8, 8)
    # Sequence tile: sized so one double-buffered tokens tile fits the budget.
    max_tl = max(8, tokens_buffer_bytes // max(1, TB * D * itemsize))
    TL = _divisor_tile(L, max_tl, 8)

    grid = (B // TB, L // TL)

    return pl.pallas_call(
        _avg_encoder_kernel,
        out_shape=jax.ShapeDtypeStruct((B, D), jnp.float32),
        grid_spec=pltpu.PrefetchScalarGridSpec(
            num_scalar_prefetch=0,
            grid=grid,
            in_specs=[
                pl.BlockSpec((TB, TL, D), lambda i, l: (i, l, 0)),   # tokens
                pl.BlockSpec((TB, TL, 1), lambda i, l: (i, l, 0)),   # mask
                pl.BlockSpec((TB, 1), lambda i, l: (i, 0)),          # lengths
            ],
            # Same block index for every l step -> output stays resident across
            # the reduction axis (required for the accumulator pattern).
            out_specs=pl.BlockSpec((TB, D), lambda i, l: (i, 0)),
            scratch_shapes=[pltpu.VMEM((TB, D), jnp.float32)],
        ),
        compiler_params=pltpu.CompilerParams(
            dimension_semantics=("parallel", "arbitrary"),
            vmem_limit_bytes=32 * 1024 * 1024,
        ),
    )(tokens, mask_f, lengths_f)


def _reference(tokens, lengths, mask):
    # Pure-JAX mirror of the PyTorch forward.
    t = tokens.astype(jnp.float32) * mask.astype(jnp.float32)[..., None]
    return jnp.sum(t, axis=1) / (lengths.reshape(-1, 1).astype(jnp.float32) + 1.0)


if __name__ == "__main__":
    # --- small demo shape consistent with the module (single grid point) ---
    key = jax.random.PRNGKey(0)
    B, L, D = 2, 8, 32
    k_tok, k_len = jax.random.split(key)
    tokens = jax.random.normal(k_tok, (B, L, D), dtype=jnp.float32)
    lengths = jax.random.randint(k_len, (B,), minval=1, maxval=L + 1, dtype=jnp.int32)
    mask = (jnp.arange(L)[None, :] < lengths[:, None]).astype(jnp.float32)

    out = average_encoder(tokens, lengths, mask)
    jax.block_until_ready(out)
    ref = _reference(tokens, lengths, mask)
    assert out.shape == (B, D)
    assert jnp.allclose(out, ref, atol=1e-5, rtol=1e-5), "mismatch vs reference (f32 case)"

    # --- bf16 case that exercises the tiled (batch x seq) grid + accumulator ---
    B2, L2, D2 = 16, 64, 128
    k_tok2, k_len2 = jax.random.split(jax.random.PRNGKey(0), 2)
    tokens2 = jax.random.normal(k_tok2, (B2, L2, D2), dtype=jnp.float32).astype(jnp.bfloat16)
    lengths2 = jax.random.randint(k_len2, (B2,), minval=1, maxval=L2 + 1, dtype=jnp.int32)
    mask2 = (jnp.arange(L2)[None, :] < lengths2[:, None]).astype(jnp.float32)

    # Tiny tokens-buffer budget to force TL < L (multi-step reduction path).
    out2 = average_encoder(tokens2, lengths2, mask2, tokens_buffer_bytes=8 * 128 * 8 * 2)
    jax.block_until_ready(out2)
    ref2 = _reference(tokens2, lengths2, mask2)
    assert out2.shape == (B2, D2)
    assert jnp.allclose(out2, ref2, atol=1e-4, rtol=1e-4), "mismatch vs reference (bf16 tiled case)"

    print("KERNEL_OK")
</pallas_src>

<mosaic_0001>
module attributes {stable_mosaic.version = 11 : i64} {
  func.func @_avg_encoder_kernel(%arg0: i32, %arg1: i32, %arg2: memref<2x8x32xf32, #tpu.memory_space<vmem>>, %arg3: memref<2x8x1xf32, #tpu.memory_space<vmem>>, %arg4: memref<2x1xf32, #tpu.memory_space<vmem>>, %arg5: memref<2x32xf32, #tpu.memory_space<vmem>>, %arg6: memref<2x32xf32, #tpu.memory_space<vmem>>) attributes {dimension_semantics = [#tpu.dimension_semantics<parallel>, #tpu.dimension_semantics<arbitrary>], iteration_bounds = array<i64: 1, 1>, scalar_prefetch = 0 : i64, scratch_operands = 1 : i64, tpu.core_type = #tpu.core_type<tc>, window_params = [{transform_indices = @transform_0, window_bounds = array<i64: 2, 8, 32>}, {transform_indices = @transform_1, window_bounds = array<i64: 2, 8, 1>}, {transform_indices = @transform_2, window_bounds = array<i64: 2, 1>}, {transform_indices = @transform_3, window_bounds = array<i64: 2, 32>}]} {
    %c0_i32 = arith.constant 0 : i32
    %0 = arith.cmpi eq, %arg1, %c0_i32 : i32
    %1 = arith.extui %0 : i1 to i32
    %c0_i32_0 = arith.constant 0 : i32
    %2 = arith.cmpi ne, %1, %c0_i32_0 : i32
    scf.if %2 {
      %cst_12 = arith.constant 0.000000e+00 : f32
      %14 = vector.broadcast %cst_12 : f32 to vector<2x32xf32>
      %c0_13 = arith.constant 0 : index
      %c0_14 = arith.constant 0 : index
      %15 = vector.load %arg6[%c0_13, %c0_14] : memref<2x32xf32, #tpu.memory_space<vmem>>, vector<2x32xf32>
      tpu.vector_store %arg6[%c0_13, %c0_14], %14 {strides = array<i32>} : memref<2x32xf32, #tpu.memory_space<vmem>>, vector<2x32xf32>,
    } else {
    }
    %c0 = arith.constant 0 : index
    %c0_1 = arith.constant 0 : index
    %c0_2 = arith.constant 0 : index
    %3 = vector.load %arg2[%c0, %c0_1, %c0_2] : memref<2x8x32xf32, #tpu.memory_space<vmem>>, vector<2x8x32xf32>
    %c0_3 = arith.constant 0 : index
    %c0_4 = arith.constant 0 : index
    %c0_5 = arith.constant 0 : index
    %4 = vector.load %arg3[%c0_3, %c0_4, %c0_5] : memref<2x8x1xf32, #tpu.memory_space<vmem>>, vector<2x8x1xf32>
    %c0_6 = arith.constant 0 : index
    %c0_7 = arith.constant 0 : index
    %5 = vector.load %arg6[%c0_6, %c0_7] : memref<2x32xf32, #tpu.memory_space<vmem>>, vector<2x32xf32>
    %6 = vector.broadcast %4 : vector<2x8x1xf32> to vector<2x8x32xf32>
    %7 = arith.mulf %3, %6 : vector<2x8x32xf32>
    %cst = arith.constant dense<0.000000e+00> : vector<2x32xf32>
    %8 = vector.multi_reduction <add>, %7, %cst [1] : vector<2x8x32xf32> to vector<2x32xf32>
    %9 = arith.addf %5, %8 : vector<2x32xf32>
    %c0_8 = arith.constant 0 : index
    %c0_9 = arith.constant 0 : index
    %10 = vector.load %arg6[%c0_8, %c0_9] : memref<2x32xf32, #tpu.memory_space<vmem>>, vector<2x32xf32>
    tpu.vector_store %arg6[%c0_8, %c0_9], %9 {strides = array<i32>} : memref<2x32xf32, #tpu.memory_space<vmem>>, vector<2x32xf32>,
    %c0_i32_10 = arith.constant 0 : i32
    %11 = arith.cmpi eq, %arg1, %c0_i32_10 : i32
    %12 = arith.extui %11 : i1 to i32
    %c0_i32_11 = arith.constant 0 : i32
    %13 = arith.cmpi ne, %12, %c0_i32_11 : i32
    scf.if %13 {
      %c0_12 = arith.constant 0 : index
      %c0_13 = arith.constant 0 : index
      %14 = vector.load %arg4[%c0_12, %c0_13] : memref<2x1xf32, #tpu.memory_space<vmem>>, vector<2x1xf32>
      %cst_14 = arith.constant 1.000000e+00 : f32
      %15 = vector.broadcast %cst_14 : f32 to vector<2x1xf32>
      %16 = arith.addf %14, %15 : vector<2x1xf32>
      %17 = tpu.reciprocal %16 : vector<2x1xf32> -> vector<2x1xf32>
      %c0_15 = arith.constant 0 : index
      %c0_16 = arith.constant 0 : index
      %18 = vector.load %arg6[%c0_15, %c0_16] : memref<2x32xf32, #tpu.memory_space<vmem>>, vector<2x32xf32>
      %19 = vector.broadcast %17 : vector<2x1xf32> to vector<2x32xf32>
      %20 = arith.mulf %18, %19 : vector<2x32xf32>
      %c0_17 = arith.constant 0 : index
      %c0_18 = arith.constant 0 : index
      %21 = vector.load %arg5[%c0_17, %c0_18] : memref<2x32xf32, #tpu.memory_space<vmem>>, vector<2x32xf32>
      tpu.vector_store %arg5[%c0_17, %c0_18], %20 {strides = array<i32>} : memref<2x32xf32, #tpu.memory_space<vmem>>, vector<2x32xf32>,
    } else {
    }
    return
  }
  func.func @transform_0(%arg0: i32, %arg1: i32) -> (i32, i32, i32) {
    %c0_i32 = arith.constant 0 : i32
    %c0_i32_0 = arith.constant 0 : i32
    return %arg0, %arg1, %c0_i32 : i32, i32, i32
  }
  func.func @transform_1(%arg0: i32, %arg1: i32) -> (i32, i32, i32) {
    %c0_i32 = arith.constant 0 : i32
    %c0_i32_0 = arith.constant 0 : i32
    return %arg0, %arg1, %c0_i32 : i32, i32, i32
  }
  func.func @transform_2(%arg0: i32, %arg1: i32) -> (i32, i32) {
    %c0_i32 = arith.constant 0 : i32
    %c0_i32_0 = arith.constant 0 : i32
    return %arg0, %c0_i32 : i32, i32
  }
  func.func @transform_3(%arg0: i32, %arg1: i32) -> (i32, i32) {
    %c0_i32 = arith.constant 0 : i32
    %c0_i32_0 = arith.constant 0 : i32
    return %arg0, %c0_i32 : i32, i32
  }
}

</mosaic_0001>

<llo_original>
// kernel: tpu_custom_call.1
$region0: #{tpu_custom_call.1}
  #allocation0 [shape = 'u32[]', space=smem, size = 0x4, offset = 0x4, fixed_abs, tag = 'smem constant byte address 0x4 - core index']
  #allocation1 [shape = 'u32[144,128]{1,0:T(1,128)}', space=vmem, size = 0x12000, scoped, tag = 'internal scratch']
  #allocation2 [shape = 'f32[2,32]{1,0:T(2,128)}', space=vmem, size = 0x400, scoped, tag = 'scratch operand']
  %s0 = inlined_call_operand.vmem [shape: f32[2,8,32], index: 0, kind: input, shape index: {}]
  %s1 = inlined_call_operand.vmem [shape: f32[2,8,1], index: 1, kind: input, shape index: {}]
  %s2 = inlined_call_operand.vmem [shape: f32[2,1], index: 2, kind: input, shape index: {}]
  %s3 = inlined_call_operand.hbm [shape: f32[2,32], index: 3, kind: output, shape index: {}]
  %s4 = sld [smem:[#allocation0]]
  $region30: #{tpu_custom_call.1} parent=0
    _
  %s6 = ssub.s32 1, %s4
  %s7 = scalar_select 0, %s6, %s4
  $region1: #{tpu_custom_call.1} parent=0
    #allocation3 [shape = 'u8[1024]{0}', space=vmem, size = 0x400, scoped, tag = 'output window, operand 0, single buffered']
    #allocation4 [shape = 's32[1]{0}', space=sflag, size = 0x4, scoped, tag = 'scoped memory for tpu_custom_call.1']
    %8 = vsyncpa [#allocation4], 0
    // Predicated region
    $region2: #{tpu_custom_call.1} parent=1 // pred_check
      _
    $region3: #{tpu_custom_call.1} parent=1 // pred_check_branch
      %10 = sbr.rel (0) target = $region5
    $region4: #{tpu_custom_call.1} parent=1 // pred_region
      _
    $region5: #{tpu_custom_call.1} parent=1 // pred_fallthru
      _
    // Predicated region
    $region6: #{tpu_custom_call.1} parent=1 // pred_check
      _
    $region7: #{tpu_custom_call.1} parent=1 // pred_check_branch
      %12 = sbr.rel (0) target = $region9
    $region8: #{tpu_custom_call.1} parent=1 // pred_region
      _
    $region9: #{tpu_custom_call.1} parent=1 // pred_fallthru
      _
    // Predicated region
    $region10: #{tpu_custom_call.1} parent=1 // pred_check
      _
    $region11: #{tpu_custom_call.1} parent=1 // pred_check_branch
      %14 = sbr.rel (0) target = $region13
    $region12: #{tpu_custom_call.1} parent=1 // pred_region
      _
    $region13: #{tpu_custom_call.1} parent=1 // pred_fallthru
      _
    %p15 = scmp.eq.s32.totalorder 0, 0
    // Predicated region
    $region14: #{tpu_custom_call.1} parent=1 // pred_check
      %p16 = pneg %p15
    $region15: #{tpu_custom_call.1} parent=1 // pred_check_branch
      %18 = sbr.rel (%p16) target = $region17
    $region16: #{tpu_custom_call.1} parent=1 // pred_region
      %vm19 = vcmask 254976
      %20 = vst.msk [vmem:[#allocation2] sm:$0x3] %vm19, 0.0
    $region17: #{tpu_custom_call.1} parent=1 // pred_fallthru
      _
    %v21 = vld [vmem:[%s0] sm:$0xff]
    %v22 = vld [vmem:[%s0 + $0x8] sm:$0xff]
    %v23 = vld [vmem:[%s1] sm:$0xff]
    %v24 = vld [vmem:[%s1 + $0x8] sm:$0xff]
    %v25 = vld [vmem:[#allocation2] sm:$0x3]
    %27 = vset.pattern.permute.xlu0 0
    %28 = vperm.xlu0 %27, %v23
    %v29 = vpop.permute.xlu0 %28
    %32 = vset.pattern.permute.xlu0 0
    %33 = vperm.xlu0 %32, %v24
    %v34 = vpop.permute.xlu0 %33
    %v36 = vmul.f32 %v21, %v29
    %v37 = vmul.f32 %v22, %v34
    %vm38 = vcmask 261120
    %v39 = vsel %vm38, %v36, 0.0
    %v40 = vrot.slane %v39, 4
    %v41 = vadd.f32 %v39, %v40
    %v42 = vrot.slane %v41, 2
    %v43 = vadd.f32 %v41, %v42
    %v44 = vrot.slane %v43, 1
    %v45 = vadd.f32 %v43, %v44
    %v46 = vsel %vm38, %v37, 0.0
    %v47 = vrot.slane %v46, 4
    %v48 = vadd.f32 %v46, %v47
    %v49 = vrot.slane %v48, 2
    %v50 = vadd.f32 %v48, %v49
    %v51 = vrot.slane %v50, 1
    %v52 = vadd.f32 %v50, %v51
    %vm55 = vcmask 1041409
    %v56 = vsel %vm55, %v52, %v45
    %v58 = vadd.f32 %v25, %v56
    %vm59 = vcmask 254976
    %60 = vst.msk [vmem:[#allocation2] sm:$0x3] %vm59, %v58
    // Predicated region
    $region18: #{tpu_custom_call.1} parent=1 // pred_check
      %p61 = pneg %p15
    $region19: #{tpu_custom_call.1} parent=1 // pred_check_branch
      %63 = sbr.rel (%p61) target = $region21
    $region20: #{tpu_custom_call.1} parent=1 // pred_region
      %v64 = vld [vmem:[%s2] sm:$0x3]
      %v65 = vadd.f32 %v64, 1.0
      %v66 = vrcp.pop %v65
      %v67 = vld [vmem:[#allocation2] sm:$0x3]
      %69 = vset.pattern.permute.xlu0 0
      %70 = vperm.xlu0 %69, %v66
      %v71 = vpop.permute.xlu0 %70
      %v73 = vmul.f32 %v67, %v71
      %74 = vst.msk [vmem:[#allocation3] sm:$0x3] %vm59, %v73
    $region21: #{tpu_custom_call.1} parent=1 // pred_fallthru
      _
    // Predicated region
    $region22: #{tpu_custom_call.1} parent=1 // pred_check
      _
    $region23: #{tpu_custom_call.1} parent=1 // pred_check_branch
      %76 = sbr.rel (0) target = $region25
    $region24: #{tpu_custom_call.1} parent=1 // pred_region
      %s78 = ssub.s32 32, 32
      %79 = vsyncadd [#allocation4], %s78
      %s81 = sshll.u32 [#allocation3], 4
      %s82 = int_to_ptr.vmem [resolvable:$true] %s81
      %84 = dma.vmem_to_hbm [thread:$0]  %s82, 32, %s3, [#allocation4]
    $region25: #{tpu_custom_call.1} parent=1 // pred_fallthru
      _
    // Predicated region
    $region26: #{tpu_custom_call.1} parent=1 // pred_check
      _
    $region27: #{tpu_custom_call.1} parent=1 // pred_check_branch
      %86 = sbr.rel (0) target = $region29
    $region28: #{tpu_custom_call.1} parent=1 // pred_region
      %87 = dma.done [#allocation4], 32
    $region29: #{tpu_custom_call.1} parent=1 // pred_fallthru
      _
    %88 = vsyncpa [#allocation4], 1

</llo_original>
